<compile_context>
chip_gen: v5e
topology: v5e:2x2
jax: 0.10.0
libtpu: 0.0.40
codegen_flags: <defaults>
</compile_context>

<pallas_src>
import functools

import jax
import jax.numpy as jnp
from jax.experimental import pallas as pl
from jax.experimental.pallas import tpu as pltpu


def _round_up(x, m):
    return ((x + m - 1) // m) * m


def actor_critic_kernel(x_ref, w1_ref, b1_ref, w2_ref, b2_ref,
                        probs_ref, value_ref, *, num_outputs):
    # Layer 1: fused actor+critic matmul, bias as a broadcast VPU add, ReLU.
    h = jnp.maximum(
        jnp.dot(x_ref[...], w1_ref[...], preferred_element_type=jnp.float32)
        + b1_ref[...],
        0.0,
    )
    # Layer 2: block-diagonal actor/critic matmul + bias.
    # Lane layout: [0, num_outputs) = actor logits, lane num_outputs = value,
    # remaining lanes are exact zeros (zero-padded weights & biases).
    out = jnp.dot(h, w2_ref[...], preferred_element_type=jnp.float32) + b2_ref[...]

    lane = jax.lax.broadcasted_iota(jnp.int32, out.shape, 1)
    is_logit = lane < num_outputs

    # Numerically-stable softmax over the logit lanes only (padding -> -inf).
    masked = jnp.where(is_logit, out, -jnp.inf)
    m = jnp.max(masked, axis=-1, keepdims=True)
    e = jnp.exp(masked - m)                       # padded lanes -> exp(-inf) = 0
    denom = jnp.sum(e, axis=-1, keepdims=True)
    probs = e / denom                             # exact divide: probs sum to 1

    # Narrow stores: only the useful lanes hit HBM.
    probs_ref[...] = probs[:, :num_outputs]
    value_ref[...] = out[:, num_outputs:num_outputs + 1]


def pack_params(params, num_inputs, num_outputs, hidden_size):
    """Pack 8 Linear tensors into (w1, b1, w2, b2) with lane-padded layouts.

    w1: [num_inputs, HID_PAD]   fused critic|actor first-layer weights
    b1: [1, HID_PAD]            fused first-layer biases
    w2: [HID_PAD, 128]          block-diagonal second layer (value in lane n_out)
    b2: [1, 128]                second-layer biases
    """
    H = hidden_size
    hid_pad = _round_up(2 * H, 128)
    out_pad = 128  # lane-dense compute width for layer 2 (stores are narrowed)

    w1 = jnp.zeros((num_inputs, hid_pad), jnp.float32)
    w1 = w1.at[:, 0:H].set(params["wc1"])
    w1 = w1.at[:, H:2 * H].set(params["wa1"])
    b1 = jnp.zeros((1, hid_pad), jnp.float32)
    b1 = b1.at[0, 0:H].set(params["bc1"][0])
    b1 = b1.at[0, H:2 * H].set(params["ba1"][0])

    w2 = jnp.zeros((hid_pad, out_pad), jnp.float32)
    w2 = w2.at[0:H, num_outputs].set(params["wc2"][:, 0])   # critic -> value lane
    w2 = w2.at[H:2 * H, 0:num_outputs].set(params["wa2"])   # actor  -> logit lanes
    b2 = jnp.zeros((1, out_pad), jnp.float32)
    b2 = b2.at[0, 0:num_outputs].set(params["ba2"][0])
    b2 = b2.at[0, num_outputs].set(params["bc2"][0, 0])
    return w1, b1, w2, b2


def actor_critic_forward(x, w1, b1, w2, b2, num_outputs, *, block_b=2048):
    """x: [B, num_inputs] f32. Packed params from pack_params. -> (probs, value)."""
    B, in_dim = x.shape
    hid_pad = w1.shape[1]
    out_pad = w2.shape[1]
    kernel = functools.partial(actor_critic_kernel, num_outputs=num_outputs)

    def cost(nb):
        return pl.CostEstimate(
            flops=2 * nb * in_dim * hid_pad + 2 * nb * hid_pad * out_pad,
            transcendentals=nb * out_pad,
            bytes_accessed=4 * (nb * in_dim + w1.size + b1.size + w2.size + b2.size
                                + nb * (num_outputs + 1)),
        )

    if B > block_b:
        # Batch-tiled path (>= 2 steps -> shards across v7x's two TensorCores).
        grid_b = pl.cdiv(B, block_b)
        b_pad = grid_b * block_b
        x_in = jnp.pad(x, ((0, b_pad - B), (0, 0))) if b_pad != B else x
        probs, value = pl.pallas_call(
            kernel,
            out_shape=(jax.ShapeDtypeStruct((b_pad, num_outputs), jnp.float32),
                       jax.ShapeDtypeStruct((b_pad, 1), jnp.float32)),
            grid=(grid_b,),
            in_specs=[
                pl.BlockSpec((block_b, in_dim), lambda i: (i, 0)),
                pl.BlockSpec(w1.shape, lambda i: (0, 0)),   # weights fully resident
                pl.BlockSpec(b1.shape, lambda i: (0, 0)),
                pl.BlockSpec(w2.shape, lambda i: (0, 0)),
                pl.BlockSpec(b2.shape, lambda i: (0, 0)),
            ],
            out_specs=(pl.BlockSpec((block_b, num_outputs), lambda i: (i, 0)),
                       pl.BlockSpec((block_b, 1), lambda i: (i, 0))),
            compiler_params=pltpu.CompilerParams(
                dimension_semantics=("parallel",)),
            cost_estimate=cost(b_pad),
        )(x_in, w1, b1, w2, b2)
        return probs[:B], value[:B]

    # Small-B path: single invocation, everything whole-array in VMEM.
    vmem = pl.BlockSpec(memory_space=pltpu.MemorySpace.VMEM)
    probs, value = pl.pallas_call(
        kernel,
        out_shape=(jax.ShapeDtypeStruct((B, num_outputs), jnp.float32),
                   jax.ShapeDtypeStruct((B, 1), jnp.float32)),
        in_specs=[vmem, vmem, vmem, vmem, vmem],
        out_specs=(vmem, vmem),
        cost_estimate=cost(B),
    )(x, w1, b1, w2, b2)
    return probs, value


def init_params(key, num_inputs, num_outputs, hidden_size):
    """PyTorch nn.Linear default init; weights stored pre-transposed as [in, out]."""
    def linear(key, fan_in, fan_out):
        kw, kb = jax.random.split(key)
        bound = 1.0 / jnp.sqrt(float(fan_in))
        w = jax.random.uniform(kw, (fan_in, fan_out), jnp.float32, -bound, bound)
        b = jax.random.uniform(kb, (1, fan_out), jnp.float32, -bound, bound)
        return w, b

    k1, k2, k3, k4 = jax.random.split(key, 4)
    wc1, bc1 = linear(k1, num_inputs, hidden_size)
    wc2, bc2 = linear(k2, hidden_size, 1)
    wa1, ba1 = linear(k3, num_inputs, hidden_size)
    wa2, ba2 = linear(k4, hidden_size, num_outputs)
    return dict(wc1=wc1, bc1=bc1, wc2=wc2, bc2=bc2,
                wa1=wa1, ba1=ba1, wa2=wa2, ba2=ba2)


def reference_forward(x, p):
    h_c = jnp.maximum(x @ p["wc1"] + p["bc1"], 0.0)
    value = h_c @ p["wc2"] + p["bc2"]
    h_a = jnp.maximum(x @ p["wa1"] + p["ba1"], 0.0)
    logits = h_a @ p["wa2"] + p["ba2"]
    probs = jax.nn.softmax(logits, axis=1)
    return probs, value


if __name__ == "__main__":
    key = jax.random.PRNGKey(0)
    k_param, k_x, k_xbig = jax.random.split(key, 3)

    num_inputs = 16
    num_outputs = 4
    hidden_size = 32

    params = init_params(k_param, num_inputs, num_outputs, hidden_size)
    w1, b1, w2, b2 = pack_params(params, num_inputs, num_outputs, hidden_size)

    # --- small batch: single-invocation path ---
    batch = 8
    x = jax.random.normal(k_x, (batch, num_inputs), jnp.float32)
    probs, value = jax.block_until_ready(
        actor_critic_forward(x, w1, b1, w2, b2, num_outputs)
    )
    probs_ref, value_ref = reference_forward(x, params)
    assert probs.shape == (batch, num_outputs)
    assert value.shape == (batch, 1)
    assert jnp.allclose(probs, probs_ref, atol=1e-4, rtol=1e-4)
    assert jnp.allclose(value, value_ref, atol=1e-4, rtol=1e-4)
    assert jnp.allclose(jnp.sum(probs, axis=1), 1.0, atol=1e-5)

    # --- larger, non-divisible batch: grid-tiled (parallel) path with padding ---
    big_batch = 600            # not a multiple of block_b -> exercises cdiv + pad
    xb = jax.random.normal(k_xbig, (big_batch, num_inputs), jnp.float32)
    probs_b, value_b = jax.block_until_ready(
        actor_critic_forward(xb, w1, b1, w2, b2, num_outputs, block_b=256)
    )
    probs_b_ref, value_b_ref = reference_forward(xb, params)
    assert probs_b.shape == (big_batch, num_outputs)
    assert value_b.shape == (big_batch, 1)
    assert jnp.allclose(probs_b, probs_b_ref, atol=1e-4, rtol=1e-4)
    assert jnp.allclose(value_b, value_b_ref, atol=1e-4, rtol=1e-4)
    assert jnp.allclose(jnp.sum(probs_b, axis=1), 1.0, atol=1e-5)

    print("KERNEL_OK")
</pallas_src>

<mosaic_0001>
module attributes {stable_mosaic.version = 11 : i64} {
  func.func @actor_critic_kernel(%arg0: memref<8x16xf32, #tpu.memory_space<vmem>>, %arg1: memref<16x128xf32, #tpu.memory_space<vmem>>, %arg2: memref<1x128xf32, #tpu.memory_space<vmem>>, %arg3: memref<128x128xf32, #tpu.memory_space<vmem>>, %arg4: memref<1x128xf32, #tpu.memory_space<vmem>>, %arg5: memref<8x4xf32, #tpu.memory_space<vmem>>, %arg6: memref<8x1xf32, #tpu.memory_space<vmem>>) attributes {dimension_semantics = [], scalar_prefetch = 0 : i64, scratch_operands = 0 : i64, tpu.core_type = #tpu.core_type<tc>} {
    %c0 = arith.constant 0 : index
    %c0_0 = arith.constant 0 : index
    %0 = vector.load %arg0[%c0, %c0_0] : memref<8x16xf32, #tpu.memory_space<vmem>>, vector<8x16xf32>
    %c0_1 = arith.constant 0 : index
    %c0_2 = arith.constant 0 : index
    %1 = vector.load %arg1[%c0_1, %c0_2] : memref<16x128xf32, #tpu.memory_space<vmem>>, vector<16x128xf32>
    %cst = arith.constant dense<0.000000e+00> : vector<8x128xf32>
    %2 = tpu.matmul %0, %1, %cst {dimension_numbers = #tpu.dot_dimension_numbers<[1], [0], [0], [1], [0, 0, 1, 1], [], []>} : vector<8x16xf32>, vector<16x128xf32>, vector<8x128xf32> -> vector<8x128xf32>
    %c0_3 = arith.constant 0 : index
    %c0_4 = arith.constant 0 : index
    %3 = vector.load %arg2[%c0_3, %c0_4] : memref<1x128xf32, #tpu.memory_space<vmem>>, vector<1x128xf32>
    %4 = vector.broadcast %3 : vector<1x128xf32> to vector<8x128xf32>
    %5 = arith.addf %2, %4 : vector<8x128xf32>
    %cst_5 = arith.constant 0.000000e+00 : f32
    %6 = vector.broadcast %cst_5 : f32 to vector<8x128xf32>
    %7 = arith.maximumf %5, %6 : vector<8x128xf32>
    %c0_6 = arith.constant 0 : index
    %c0_7 = arith.constant 0 : index
    %8 = vector.load %arg3[%c0_6, %c0_7] : memref<128x128xf32, #tpu.memory_space<vmem>>, vector<128x128xf32>
    %cst_8 = arith.constant dense<0.000000e+00> : vector<8x128xf32>
    %9 = tpu.matmul %7, %8, %cst_8 {dimension_numbers = #tpu.dot_dimension_numbers<[1], [0], [0], [1], [0, 0, 1, 1], [], []>} : vector<8x128xf32>, vector<128x128xf32>, vector<8x128xf32> -> vector<8x128xf32>
    %c0_9 = arith.constant 0 : index
    %c0_10 = arith.constant 0 : index
    %10 = vector.load %arg4[%c0_9, %c0_10] : memref<1x128xf32, #tpu.memory_space<vmem>>, vector<1x128xf32>
    %11 = vector.broadcast %10 : vector<1x128xf32> to vector<8x128xf32>
    %12 = arith.addf %9, %11 : vector<8x128xf32>
    %13 = tpu.iota {dimensions = array<i32: 1>} : vector<8x128xi32>
    %c4_i32 = arith.constant 4 : i32
    %14 = vector.broadcast %c4_i32 : i32 to vector<8x128xi32>
    %15 = arith.cmpi slt, %13, %14 : vector<8x128xi32>
    %cst_11 = arith.constant 0xFF800000 : f32
    %16 = vector.broadcast %cst_11 : f32 to vector<8x128xf32>
    %17 = arith.select %15, %12, %16 : vector<8x128xi1>, vector<8x128xf32>
    %cst_12 = arith.constant dense<0xFF800000> : vector<8xf32>
    %18 = vector.multi_reduction <maximumf>, %17, %cst_12 [1] : vector<8x128xf32> to vector<8xf32>
    %19 = vector.shape_cast %18 : vector<8xf32> to vector<8x1xf32>
    %20 = vector.broadcast %19 : vector<8x1xf32> to vector<8x128xf32>
    %21 = arith.subf %17, %20 : vector<8x128xf32>
    %22 = math.exp %21 : vector<8x128xf32>
    %cst_13 = arith.constant dense<0.000000e+00> : vector<8xf32>
    %23 = vector.multi_reduction <add>, %22, %cst_13 [1] : vector<8x128xf32> to vector<8xf32>
    %24 = vector.shape_cast %23 : vector<8xf32> to vector<8x1xf32>
    %25 = vector.broadcast %24 : vector<8x1xf32> to vector<8x128xf32>
    %26 = arith.divf %22, %25 : vector<8x128xf32>
    %27 = vector.extract_strided_slice %26 {offsets = [0, 0], sizes = [8, 4], strides = [1, 1]} : vector<8x128xf32> to vector<8x4xf32>
    %c0_14 = arith.constant 0 : index
    %c0_15 = arith.constant 0 : index
    %28 = vector.load %arg5[%c0_14, %c0_15] : memref<8x4xf32, #tpu.memory_space<vmem>>, vector<8x4xf32>
    tpu.vector_store %arg5[%c0_14, %c0_15], %27 {strides = array<i32>} : memref<8x4xf32, #tpu.memory_space<vmem>>, vector<8x4xf32>,
    %29 = vector.extract_strided_slice %12 {offsets = [0, 4], sizes = [8, 1], strides = [1, 1]} : vector<8x128xf32> to vector<8x1xf32>
    %c0_16 = arith.constant 0 : index
    %c0_17 = arith.constant 0 : index
    %30 = vector.load %arg6[%c0_16, %c0_17] : memref<8x1xf32, #tpu.memory_space<vmem>>, vector<8x1xf32>
    tpu.vector_store %arg6[%c0_16, %c0_17], %29 {strides = array<i32>} : memref<8x1xf32, #tpu.memory_space<vmem>>, vector<8x1xf32>,
    return
  }
}

</mosaic_0001>

<llo_original>
// kernel: tpu_custom_call.1
$region0: #{tpu_custom_call.1}
  #allocation0 [shape = 'u32[]', space=smem, size = 0x4, offset = 0x4, fixed_abs, tag = 'smem constant byte address 0x4 - core index']
  #allocation1 [shape = 'u32[72,128]{1,0:T(1,128)}', space=vmem, size = 0x9000, scoped, tag = 'internal scratch']
  %s0 = inlined_call_operand.hbm [shape: f32[8,16], index: 0, kind: input, shape index: {}]
  %s1 = inlined_call_operand.hbm [shape: f32[16,128], index: 1, kind: input, shape index: {}]
  %s2 = inlined_call_operand.vmem [shape: f32[1,128], index: 2, kind: input, shape index: {}]
  %s3 = inlined_call_operand.hbm [shape: f32[128,128], index: 3, kind: input, shape index: {}]
  %s4 = inlined_call_operand.vmem [shape: f32[1,128], index: 4, kind: input, shape index: {}]
  %s5 = inlined_call_operand.vmem [shape: f32[8,4], index: 5, kind: output, shape index: {0}]
  %s6 = inlined_call_operand.vmem [shape: f32[8,1], index: 6, kind: output, shape index: {1}]
  %7 = xla_tuple %s5, %s6
  %s8 = sld [smem:[#allocation0]]
  $region50: #{tpu_custom_call.1} parent=0
    _
  %s10 = ssub.s32 1, %s8
  %s11 = scalar_select 0, %s10, %s8
  $region1: #{tpu_custom_call.1} parent=0
    #allocation2 [shape = 'u8[4096]{0}', space=vmem, size = 0x1000, scoped, tag = 'input window, operand 0, single buffered']
    #allocation3 [shape = 's32[1]{0}', space=sflag, size = 0x4, scoped, tag = 'scoped memory for tpu_custom_call.1']
    #allocation4 [shape = 'u8[8192]{0}', space=vmem, size = 0x2000, scoped, tag = 'input window, operand 1, single buffered']
    #allocation5 [shape = 's32[1]{0}', space=sflag, size = 0x4, scoped, tag = 'scoped memory for tpu_custom_call.1']
    #allocation6 [shape = 'u8[65536]{0}', space=vmem, size = 0x10000, scoped, tag = 'input window, operand 3, single buffered']
    %12 = vsyncpa [#allocation3], 0
    %13 = vsyncpa [#allocation5], 0
    // Predicated region
    $region2: #{tpu_custom_call.1} parent=1 // pred_check
      _
    $region3: #{tpu_custom_call.1} parent=1 // pred_check_branch
      %15 = sbr.rel (0) target = $region5
    $region4: #{tpu_custom_call.1} parent=1 // pred_region
      %17 = vsyncadd [#allocation3], 0
      %s19 = sshll.u32 %s0, 4
      %s20 = int_to_ptr.hbm [resolvable:$true] %s19
      %s21 = sshll.u32 [#allocation2], 4
      %s22 = int_to_ptr.vmem [resolvable:$true] %s21
      %24 = dma.hbm_to_vmem [thread:$0]  %s20, 128, %s22, [#allocation3]
    $region5: #{tpu_custom_call.1} parent=1 // pred_fallthru
      _
    // Predicated region
    $region6: #{tpu_custom_call.1} parent=1 // pred_check
      _
    $region7: #{tpu_custom_call.1} parent=1 // pred_check_branch
      %26 = sbr.rel (0) target = $region9
    $region8: #{tpu_custom_call.1} parent=1 // pred_region
      %28 = vsyncadd [#allocation5], 0
      %s29 = sshll.u32 %s1, 4
      %s30 = int_to_ptr.hbm [resolvable:$true] %s29
      %s31 = sshll.u32 [#allocation4], 4
      %s32 = int_to_ptr.vmem [resolvable:$true] %s31
      %37 = dma.hbm_to_vmem [thread:$0]  %s30, 256, %s32, [#allocation5], 128, 128, 8
    $region9: #{tpu_custom_call.1} parent=1 // pred_fallthru
      _
    // Predicated region
    $region10: #{tpu_custom_call.1} parent=1 // pred_check
      _
    $region11: #{tpu_custom_call.1} parent=1 // pred_check_branch
      %39 = sbr.rel (0) target = $region13
    $region12: #{tpu_custom_call.1} parent=1 // pred_region
      _
    $region13: #{tpu_custom_call.1} parent=1 // pred_fallthru
      _
    // Predicated region
    $region14: #{tpu_custom_call.1} parent=1 // pred_check
      _
    $region15: #{tpu_custom_call.1} parent=1 // pred_check_branch
      %41 = sbr.rel (0) target = $region17
    $region16: #{tpu_custom_call.1} parent=1 // pred_region
      %43 = vsyncadd [#allocation5], 0
      %s44 = sshll.u32 %s3, 4
      %s45 = int_to_ptr.hbm [resolvable:$true] %s44
      %s46 = sshll.u32 [#allocation6], 4
      %s47 = int_to_ptr.vmem [resolvable:$true] %s46
      %52 = dma.hbm_to_vmem [thread:$0]  %s45, 2048, %s47, [#allocation5], 128, 128, 8
    $region17: #{tpu_custom_call.1} parent=1 // pred_fallthru
      _
    // Predicated region
    $region18: #{tpu_custom_call.1} parent=1 // pred_check
      _
    $region19: #{tpu_custom_call.1} parent=1 // pred_check_branch
      %54 = sbr.rel (0) target = $region21
    $region20: #{tpu_custom_call.1} parent=1 // pred_region
      _
    $region21: #{tpu_custom_call.1} parent=1 // pred_fallthru
      _
    // Predicated region
    $region22: #{tpu_custom_call.1} parent=1 // pred_check
      _
    $region23: #{tpu_custom_call.1} parent=1 // pred_check_branch
      %56 = sbr.rel (0) target = $region25
    $region24: #{tpu_custom_call.1} parent=1 // pred_region
      %58 = dma.done [#allocation3], 128
    $region25: #{tpu_custom_call.1} parent=1 // pred_fallthru
      _
    // Predicated region
    $region26: #{tpu_custom_call.1} parent=1 // pred_check
      _
    $region27: #{tpu_custom_call.1} parent=1 // pred_check_branch
      %60 = sbr.rel (0) target = $region29
    $region28: #{tpu_custom_call.1} parent=1 // pred_region
      %62 = dma.done [#allocation5], 256
    $region29: #{tpu_custom_call.1} parent=1 // pred_fallthru
      _
    // Predicated region
    $region30: #{tpu_custom_call.1} parent=1 // pred_check
      _
    $region31: #{tpu_custom_call.1} parent=1 // pred_check_branch
      %64 = sbr.rel (0) target = $region33
    $region32: #{tpu_custom_call.1} parent=1 // pred_region
      %66 = dma.done [#allocation5], 2048
    $region33: #{tpu_custom_call.1} parent=1 // pred_fallthru
      _
    %v67 = vld [vmem:[#allocation2] sm:$0xff]
    %v68 = vld [vmem:[#allocation4] sm:$0xff]
    %v69 = vld [vmem:[#allocation4 + $0x8] sm:$0xff]
    %v70 = vld [vmem:[%s2] sm:$0x1]
    %v72 = vperm.slane %v70, 0
    %vm74 = vcmask 130048
    %v76 = vsel %vm74, %v67, 0
    %78 = vmatpush.msra.mxu0 0.0
    %79 = vmatpush.msra.mxu0 0.0
    %80 = vmatpush.msra.mxu0 0.0
    %81 = vmatpush.msra.mxu0 0.0
    %82 = vmatpush.msra.mxu0 0.0
    %83 = vmatpush.msra.mxu0 0.0
    %84 = vmatpush.msra.mxu0 0.0
    %85 = vmatpush.msra.mxu0 0.0
    %86 = vmatpush.msra.mxu0 0.0
    %87 = vmatpush.msra.mxu0 0.0
    %88 = vmatpush.msra.mxu0 0.0
    %89 = vmatpush.msra.mxu0 0.0
    %90 = vmatpush.msra.mxu0 0.0
    %91 = vmatpush.msra.mxu0 0.0
    %92 = vmatpush.msra.mxu0 %v69
    %93 = vmatpush.msra.mxu0 %v68
    %94 = vmatmul.f32.gmra.mxu0 %v76
    %v95 = vpop.f32.mrf.mxu0
    %v96 = vadd.f32 %v72, %v95
    %97 = vdwg.mxu0
    %v98 = vmax.f32 %v96, 0.0
    %v99 = vld [vmem:[#allocation6] sm:$0xff]
    %v100 = vld [vmem:[#allocation6 + $0x8] sm:$0xff]
    %v101 = vld [vmem:[#allocation6 + $0x10] sm:$0xff]
    %v102 = vld [vmem:[#allocation6 + $0x18] sm:$0xff]
    %v103 = vld [vmem:[#allocation6 + $0x20] sm:$0xff]
    %v104 = vld [vmem:[#allocation6 + $0x28] sm:$0xff]
    %v105 = vld [vmem:[#allocation6 + $0x30] sm:$0xff]
    %v106 = vld [vmem:[#allocation6 + $0x38] sm:$0xff]
    %v107 = vld [vmem:[#allocation6 + $0x40] sm:$0xff]
    %v108 = vld [vmem:[#allocation6 + $0x48] sm:$0xff]
    %v109 = vld [vmem:[#allocation6 + $0x50] sm:$0xff]
    %v110 = vld [vmem:[#allocation6 + $0x58] sm:$0xff]
    %v111 = vld [vmem:[#allocation6 + $0x60] sm:$0xff]
    %v112 = vld [vmem:[#allocation6 + $0x68] sm:$0xff]
    %v113 = vld [vmem:[#allocation6 + $0x70] sm:$0xff]
    %v114 = vld [vmem:[#allocation6 + $0x78] sm:$0xff]
    %v115 = vld [vmem:[%s4] sm:$0x1]
    %v117 = vperm.slane %v115, 0
    %119 = vmatpush.msra.mxu0 %v114
    %120 = vmatpush.msra.mxu0 %v113
    %121 = vmatpush.msra.mxu0 %v112
    %122 = vmatpush.msra.mxu0 %v111
    %123 = vmatpush.msra.mxu0 %v110
    %124 = vmatpush.msra.mxu0 %v109
    %125 = vmatpush.msra.mxu0 %v108
    %126 = vmatpush.msra.mxu0 %v107
    %127 = vmatpush.msra.mxu0 %v106
    %128 = vmatpush.msra.mxu0 %v105
    %129 = vmatpush.msra.mxu0 %v104
    %130 = vmatpush.msra.mxu0 %v103
    %131 = vmatpush.msra.mxu0 %v102
    %132 = vmatpush.msra.mxu0 %v101
    %133 = vmatpush.msra.mxu0 %v100
    %134 = vmatpush.msra.mxu0 %v99
    %135 = vmatmul.f32.gmra.mxu0 %v98
    %v136 = vpop.f32.mrf.mxu0
    %v137 = vadd.f32 %v117, %v136
    %138 = vdwg.mxu0
    %v139 = vlaneseq
    %v140 = vand.u32 %v139, 127
    %vm141 = vcmp.lt.s32.totalorder %v140, 4
    %v142 = vsel %vm141, %v137, -inf
    %143 = vmax.xlane.f32.xlu0 %v142
    %v144 = vpop.xlane.xlu0 %143
    %v145 = vsub.f32 %v142, %v144
    %v146 = vmul.f32 %v145, 1.442695
    %v147 = vpow.pop %v146
    %148 = vadd.xlane.f32.xlu0 %v147
    %v149 = vpop.xlane.xlu0 %148
    %v150 = vrcp.pop %v149
    %v151 = vmul.f32 %v149, %v150
    %v152 = vsub.f32 1.0, %v151
    %v153 = vmul.f32 %v150, %v152
    %v154 = vadd.f32 %v150, %v153
    %vm155 = vweird.f32 %v149
    %vm156 = vweird.f32 %v150
    %vm157 = vmor %vm155, %vm156
    %v158 = vsel %vm157, %v150, %v154
    %v159 = vand.u32 2147483647, %v149
    %vm160 = vcmp.eq.f32.partialorder %v159, 8.507059e+37
    %v161 = vand.u32 %v149, 2147483648
    %v162 = vor.u32 1.1754944e-38, %v161
    %v163 = vsel %vm160, %v162, %v158
    %v164 = vmul.f32 %v147, %v163
    %vm165 = vcmask 31744
    %166 = vst.msk [vmem:[%s5] sm:$0xff] %vm165, %v164
    %168 = vrot.lane.b32.xlu0 %v137, 124
    %v169 = vpop.permute.xlu0 %168
    %vm171 = vcmask 7168
    %172 = vst.msk [vmem:[%s6] sm:$0xff] %vm171, %v169
    // Predicated region
    $region34: #{tpu_custom_call.1} parent=1 // pred_check
      _
    $region35: #{tpu_custom_call.1} parent=1 // pred_check_branch
      %174 = sbr.rel (0) target = $region37
    $region36: #{tpu_custom_call.1} parent=1 // pred_region
      _
    $region37: #{tpu_custom_call.1} parent=1 // pred_fallthru
      _
    // Predicated region
    $region38: #{tpu_custom_call.1} parent=1 // pred_check
      _
    $region39: #{tpu_custom_call.1} parent=1 // pred_check_branch
      %176 = sbr.rel (0) target = $region41
    $region40: #{tpu_custom_call.1} parent=1 // pred_region
      _
    $region41: #{tpu_custom_call.1} parent=1 // pred_fallthru
      _
    // Predicated region
    $region42: #{tpu_custom_call.1} parent=1 // pred_check
      _
    $region43: #{tpu_custom_call.1} parent=1 // pred_check_branch
      %178 = sbr.rel (0) target = $region45
    $region44: #{tpu_custom_call.1} parent=1 // pred_region
      _
    $region45: #{tpu_custom_call.1} parent=1 // pred_fallthru
      _
    // Predicated region
    $region46: #{tpu_custom_call.1} parent=1 // pred_check
      _
    $region47: #{tpu_custom_call.1} parent=1 // pred_check_branch
      %180 = sbr.rel (0) target = $region49
    $region48: #{tpu_custom_call.1} parent=1 // pred_region
      _
    $region49: #{tpu_custom_call.1} parent=1 // pred_fallthru
      _
    %181 = vsyncpa [#allocation3], 1
    %182 = vsyncpa [#allocation5], 1

</llo_original>
